<compile_context>
chip_gen: v7x
topology: tpu7x:2x2x1
jax: 0.10.0
libtpu: 0.0.40
codegen_flags: <defaults>
</compile_context>

<pallas_src>
import math
import functools

import jax
import jax.numpy as jnp
from jax.experimental import pallas as pl
from jax.experimental.pallas import tpu as pltpu

TWO_PI = 2.0 * math.pi

# Below this element count the fixed pallas_call overhead dominates the
# ~12 bytes/elem of HBM traffic; let XLA fuse the elementwise chain instead.
_PALLAS_MIN_ELEMS = 64 * 1024

_TARGET_BLOCK_BYTES = 4 << 20      # per array, per block (~4 MiB)
_MIN_ROW_BLOCKS = 4                # keep >=4 row blocks when tall enough (v7x megacore)
_VMEM_LIMIT_BYTES = 40 << 20       # explicit scoped-VMEM limit (safe on v5e/v6e/v7x)


def _soma_kernel(phase_ref, new_phase_ref, activity_ref, *, phase_step):
    """Elementwise: advance phase, wrap to [0, 2*pi), take cosine (f32 math)."""
    p = phase_ref[...].astype(jnp.float32) + phase_step
    # torch's float `%` is floor-mod (sign of divisor) == jnp.mod.
    p = jnp.mod(p, TWO_PI)
    new_phase_ref[...] = p.astype(new_phase_ref.dtype)
    activity_ref[...] = jnp.cos(p).astype(activity_ref.dtype)  # EUP; hidden under DMA.


def _plain_forward(phase, phase_step):
    p32 = jnp.mod(phase.astype(jnp.float32) + phase_step, TWO_PI)
    return p32.astype(phase.dtype), jnp.cos(p32).astype(phase.dtype)


def _sublane(dtype) -> int:
    """Sublane tile for this dtype: 8 for f32, 16 for bf16, 32 for i8/fp8."""
    return max(8, 32 // jnp.dtype(dtype).itemsize)


def _round_up(x, m):
    return -(-x // m) * m


def _as_lane_dense_2d(x):
    """Collapse to a lane-dense 2-D slab (free, row-major).  None if impossible."""
    size = x.size
    if x.ndim >= 2 and x.shape[-1] % 128 == 0:
        return x.reshape(size // x.shape[-1], x.shape[-1])
    for c in (2048, 1024, 512, 256, 128):
        if size % c == 0:
            return x.reshape(size // c, c)
    if x.ndim == 2:
        # Run as-is; Pallas masks the ragged lane edge (correct, just slower stores).
        return x
    return None


def _pick_blocks(n, t, itemsize, sub):
    """Choose (block_rows, block_cols).  Prefer full-width, row-tiled blocks."""
    bc = t
    rows_budget = _TARGET_BLOCK_BYTES // max(1, bc * itemsize)
    if rows_budget < sub:
        # A full-width row strip is too big for the budget: split columns
        # (128-multiple) and keep the minimum sublane-aligned row block.
        bc = max(128, ((_TARGET_BLOCK_BYTES // (sub * itemsize)) // 128) * 128)
        bc = min(bc, t)
        rows_budget = _TARGET_BLOCK_BYTES // max(1, bc * itemsize)
    br = max(sub, (rows_budget // sub) * sub)
    # v7x has 2 TensorCores: guarantee several row blocks when tall enough so a
    # "parallel" grid axis actually has work to shard.  Extra grid steps cost
    # only ~0.35 us each, negligible at these sizes.
    if n > _MIN_ROW_BLOCKS * sub:
        br = min(br, _round_up(-(-n // _MIN_ROW_BLOCKS), sub))
    if br >= n:
        br = n  # full-extent block is always legal
    return br, bc


class Soma:
    """JAX/Pallas port of the PyTorch Soma module."""

    def __init__(self, samples_per_second: float, theta_frequency: float):
        self.angular_frequency = theta_frequency * 2.0 * math.pi
        self.phase_step = self.angular_frequency / samples_per_second

    def forward(self, phase: jax.Array, *, block_rows=None, block_cols=None,
                force_pallas: bool = False):
        """phase: any-shape float array.  Returns (phase, activity).

        For best performance, callers running this inside jax.jit should donate
        the `phase` argument (donate_argnums) so the phase->new_phase aliasing
        elides the HBM buffer instead of triggering a defensive copy.
        """
        phase = jnp.asarray(phase)
        if not jnp.issubdtype(phase.dtype, jnp.floating):
            phase = phase.astype(jnp.float32)

        # Tiny tensors: plain XLA fusion beats a kernel launch.
        if phase.size == 0 or (not force_pallas and phase.size < _PALLAS_MIN_ELEMS):
            return _plain_forward(phase, self.phase_step)

        orig_shape = phase.shape
        x2d = _as_lane_dense_2d(phase)
        if x2d is None:
            # No lane-dense collapse available for this shape.
            return _plain_forward(phase, self.phase_step)

        n, t = x2d.shape
        itemsize = jnp.dtype(x2d.dtype).itemsize
        sub = _sublane(x2d.dtype)
        br_auto, bc_auto = _pick_blocks(n, t, itemsize, sub)
        br = block_rows if block_rows is not None else br_auto
        bc = block_cols if block_cols is not None else bc_auto
        grid = (pl.cdiv(n, br), pl.cdiv(t, bc))

        kernel = functools.partial(_soma_kernel, phase_step=self.phase_step)
        idx = lambda i, j: (i, j)

        new_phase, activity = pl.pallas_call(
            kernel,
            out_shape=(
                jax.ShapeDtypeStruct((n, t), x2d.dtype),
                jax.ShapeDtypeStruct((n, t), x2d.dtype),
            ),
            grid_spec=pl.GridSpec(
                grid=grid,
                in_specs=[pl.BlockSpec((br, bc), idx)],
                out_specs=(
                    pl.BlockSpec((br, bc), idx),
                    pl.BlockSpec((br, bc), idx),
                ),
            ),
            # phase is semantically overwritten -> reuse its HBM buffer
            # (effective only when the caller donates the input; see docstring).
            input_output_aliases={0: 0},
            cost_estimate=pl.CostEstimate(
                flops=3 * n * t,
                transcendentals=n * t,
                bytes_accessed=3 * itemsize * n * t,
            ),
            compiler_params=pltpu.CompilerParams(
                dimension_semantics=("parallel", "parallel"),
                vmem_limit_bytes=_VMEM_LIMIT_BYTES,
            ),
        )(x2d)

        return new_phase.reshape(orig_shape), activity.reshape(orig_shape)

    def reset(self, phase_offset: jax.Array):
        # No state advance; plain JAX is the right tool here.
        phase_offset = jnp.asarray(phase_offset)
        return phase_offset, jnp.cos(phase_offset)


if __name__ == "__main__":
    key = jax.random.PRNGKey(0)
    k1, k2, k3, k4 = jax.random.split(key, 4)
    soma = Soma(samples_per_second=1000.0, theta_frequency=8.0)
    atol = 1e-6

    # 1) 2-D lane-dense input, multi-row-block grid (forced Pallas path).
    #    _pick_blocks -> full-width blocks, 4 row blocks (96 rows / 24-row blocks).
    p1 = jax.random.uniform(k1, (96, 256), jnp.float32, 0.0, TWO_PI)
    r1p, r1a = _plain_forward(p1, soma.phase_step)        # reference BEFORE aliased call
    o1p, o1a = soma.forward(p1, force_pallas=True)
    jax.block_until_ready((o1p, o1a))
    assert o1p.shape == p1.shape and o1a.shape == p1.shape
    assert jnp.allclose(o1p, r1p, atol=atol), "phase mismatch (2-D pallas)"
    assert jnp.allclose(o1a, r1a, atol=atol), "activity mismatch (2-D pallas)"

    # 2) 3-D batch: collapsed to a lane-dense 2-D slab inside forward().
    p2 = jax.random.uniform(k2, (2, 16, 128), jnp.float32, 0.0, TWO_PI)
    r2p, r2a = _plain_forward(p2, soma.phase_step)
    o2p, o2a = soma.forward(p2, force_pallas=True)
    jax.block_until_ready((o2p, o2a))
    assert o2p.shape == p2.shape
    assert jnp.allclose(o2p, r2p, atol=atol), "phase mismatch (3-D pallas)"
    assert jnp.allclose(o2a, r2a, atol=atol), "activity mismatch (3-D pallas)"

    # 3) 2-D ragged (non-128-multiple) width: still correct via full-extent blocks.
    p3 = jax.random.uniform(k3, (8, 40), jnp.float32, 0.0, TWO_PI)
    r3p, r3a = _plain_forward(p3, soma.phase_step)
    o3p, o3a = soma.forward(p3, force_pallas=True)
    jax.block_until_ready((o3p, o3a))
    assert jnp.allclose(o3p, r3p, atol=atol), "phase mismatch (ragged pallas)"
    assert jnp.allclose(o3a, r3a, atol=atol), "activity mismatch (ragged pallas)"

    # 4) Small-tensor fallback path (plain fused jnp, no kernel launch).
    p4 = jax.random.uniform(k4, (16, 32), jnp.float32, 0.0, TWO_PI)
    o4p, o4a = soma.forward(p4)
    r4p, r4a = _plain_forward(p4, soma.phase_step)
    jax.block_until_ready((o4p, o4a))
    assert jnp.allclose(o4p, r4p, atol=atol) and jnp.allclose(o4a, r4a, atol=atol)

    # reset() sanity.
    rp, ra = soma.reset(p4)
    assert jnp.allclose(ra, jnp.cos(p4), atol=atol)

    print("KERNEL_OK")
</pallas_src>

<mosaic_0001>
module attributes {stable_mosaic.version = 11 : i64} {
  func.func @_soma_kernel(%arg0: i32, %arg1: i32, %arg2: memref<24x256xf32, #tpu.memory_space<vmem>>, %arg3: memref<24x256xf32, #tpu.memory_space<vmem>>, %arg4: memref<24x256xf32, #tpu.memory_space<vmem>>) attributes {dimension_semantics = [#tpu.dimension_semantics<parallel>, #tpu.dimension_semantics<parallel>], iteration_bounds = array<i64: 4, 1>, scalar_prefetch = 0 : i64, scratch_operands = 0 : i64, tpu.core_type = #tpu.core_type<tc>, window_params = [{transform_indices = @transform_0, window_bounds = array<i64: 24, 256>}, {transform_indices = @transform_1, window_bounds = array<i64: 24, 256>}, {transform_indices = @transform_2, window_bounds = array<i64: 24, 256>}]} {
    %c0 = arith.constant 0 : index
    %c0_0 = arith.constant 0 : index
    %0 = vector.load %arg2[%c0, %c0_0] : memref<24x256xf32, #tpu.memory_space<vmem>>, vector<24x256xf32>
    %cst = arith.constant 0.0502654836 : f32
    %1 = vector.broadcast %cst : f32 to vector<24x256xf32>
    %2 = arith.addf %0, %1 : vector<24x256xf32>
    %cst_1 = arith.constant 6.28318548 : f32
    %3 = vector.broadcast %cst_1 : f32 to vector<24x256xf32>
    %4 = arith.remf %2, %3 : vector<24x256xf32>
    %cst_2 = arith.constant 0.000000e+00 : f32
    %5 = vector.broadcast %cst_2 : f32 to vector<24x256xf32>
    %6 = arith.cmpf one, %4, %5 : vector<24x256xf32>
    %cst_3 = arith.constant 0.000000e+00 : f32
    %7 = vector.broadcast %cst_3 : f32 to vector<24x256xf32>
    %8 = arith.cmpf olt, %4, %7 : vector<24x256xf32>
    %cst_4 = arith.constant 0.000000e+00 : f32
    %9 = arith.cmpf olt, %cst_1, %cst_4 : f32
    %10 = vector.broadcast %9 : i1 to vector<24x256xi1>
    %11 = vector.broadcast %10 : vector<24x256xi1> to vector<24x256xi1>
    %12 = arith.xori %8, %11 : vector<24x256xi1>
    %13 = arith.andi %12, %6 : vector<24x256xi1>
    %14 = vector.broadcast %cst_1 : f32 to vector<24x256xf32>
    %15 = arith.addf %4, %14 : vector<24x256xf32>
    %16 = arith.select %13, %15, %4 : vector<24x256xi1>, vector<24x256xf32>
    %c0_5 = arith.constant 0 : index
    %c0_6 = arith.constant 0 : index
    %17 = vector.load %arg3[%c0_5, %c0_6] : memref<24x256xf32, #tpu.memory_space<vmem>>, vector<24x256xf32>
    tpu.vector_store %arg3[%c0_5, %c0_6], %16 {strides = array<i32>} : memref<24x256xf32, #tpu.memory_space<vmem>>, vector<24x256xf32>,
    %18 = math.cos %16 : vector<24x256xf32>
    %c0_7 = arith.constant 0 : index
    %c0_8 = arith.constant 0 : index
    %19 = vector.load %arg4[%c0_7, %c0_8] : memref<24x256xf32, #tpu.memory_space<vmem>>, vector<24x256xf32>
    tpu.vector_store %arg4[%c0_7, %c0_8], %18 {strides = array<i32>} : memref<24x256xf32, #tpu.memory_space<vmem>>, vector<24x256xf32>,
    return
  }
  func.func @transform_0(%arg0: i32, %arg1: i32) -> (i32, i32) {
    %c0_i32 = arith.constant 0 : i32
    return %arg0, %arg1 : i32, i32
  }
  func.func @transform_1(%arg0: i32, %arg1: i32) -> (i32, i32) {
    %c0_i32 = arith.constant 0 : i32
    return %arg0, %arg1 : i32, i32
  }
  func.func @transform_2(%arg0: i32, %arg1: i32) -> (i32, i32) {
    %c0_i32 = arith.constant 0 : i32
    return %arg0, %arg1 : i32, i32
  }
}

</mosaic_0001>

<llo_original>
// kernel: tpu_custom_call.1
$region0: #{tpu_custom_call.1}
  #allocation0 [shape = 'u32[]', space=smem, size = 0x4, offset = 0x4, fixed_abs, tag = 'smem constant byte address 0x4 - core index']
  #allocation1 [shape = 'u32[144,128]{1,0:T(1,128)}', space=vmem, size = 0x12000, scoped, tag = 'internal scratch']
  %s0 = inlined_call_operand.hbm [shape: f32[96,256], index: 0, kind: input, shape index: {}, may-alias: {0,1}]
  %s1 = inlined_call_operand.hbm [shape: f32[96,256], index: 1, kind: output, shape index: {0}, may-alias: {0,1}]
  %s2 = inlined_call_operand.hbm [shape: f32[96,256], index: 2, kind: output, shape index: {1}]
  %3 = xla_tuple %s1, %s2
  %s4 = sld [smem:[#allocation0]]
  $region49: #{tpu_custom_call.1} parent=0
    _
  %s6 = ssub.s32 1, %s4
  %s7 = scalar_select 0, %s6, %s4
  $region1: #{tpu_custom_call.1} parent=0
    #allocation2 [shape = 'u8[49152]{0}', space=vmem, size = 0xc000, scoped, tag = 'input window, operand 0']
    #allocation3 [shape = 's32[2]{0}', space=sflag, size = 0x8, scoped, tag = 'scoped memory for tpu_custom_call.1']
    #allocation4 [shape = 's32[2]{0}', space=sflag, size = 0x8, scoped, tag = 'scoped memory for tpu_custom_call.1']
    #allocation5 [shape = 'u8[49152]{0}', space=vmem, size = 0xc000, scoped, tag = 'output window, operand 0']
    #allocation6 [shape = 'u8[49152]{0}', space=vmem, size = 0xc000, scoped, tag = 'output window, operand 1']
    #allocation7 [shape = 's32[2]{0}', space=sflag, size = 0x8, scoped, tag = 'scoped memory for tpu_custom_call.1']
    %8 = vsyncpa [#allocation3], 0
    %s9 = scalar_lea.sflag [#allocation3], 1
    %10 = vsyncpa %s9, 0
    %11 = vsyncpa [#allocation4], 0
    %s12 = scalar_lea.sflag [#allocation4], 1
    %13 = vsyncpa %s12, 0
    %14 = vsyncpa [#allocation7], 0
    %s15 = scalar_lea.sflag [#allocation7], 1
    %16 = vsyncpa %s15, 0
    loop: start=0, step=1, limit=6
    $region2: #{tpu_custom_call.1} parent=1 // loop_pre_header
      _
    $region3: #{tpu_custom_call.1} parent=1 // loop_header
      %s18 = sphi 0, %s22
      %p19 = scmp.ge.s32.totalorder %s18, 6
      %s25 = sphi 0, %s37
      %s26 = sphi 0, %s33
      %s27 = sphi 0, %s25
      %s28 = sphi 0, %s26
      %s29 = sphi 0, %s27
      %s30 = sphi 0, %s28
      %s42 = sphi 0, %s44
      %s45 = sphi 0, %s42
      %s46 = sphi 0, %s45
      %s62 = sphi 0, %s46
      %s70 = sphi 0, %s72
      %s73 = sphi 0, %s70
      %s74 = sphi 0, %s73
      %s90 = sphi 0, %s74
      %s98 = sphi 0, %s100
      %s101 = sphi 0, %s98
      %s102 = sphi 0, %s101
      %s118 = sphi 0, %s102
    $region4: #{tpu_custom_call.1} parent=1 // loop_header_branch
      %21 = sbr.rel (%p19) target = $region8
    $region5: #{tpu_custom_call.1} parent=1 // loop_body
      %s23 = ssub.s32 %s18, 1
      %s24 = ssub.s32 %s18, 2
      %s31 = sadd.s32 1, %s26
      %p32 = scmp.ge.s32.totalorder %s31, 1
      %s33 = scalar_select %p32, 0, %s31
      %s34 = sadd.s32 1, %s25
      %s35 = scalar_select %p32, %s34, %s25
      %p36 = scmp.ge.s32.totalorder %s35, 4
      %s37 = scalar_select %p36, 0, %s35
      %s38 = ssub.s32 %s25, %s37
      %s39 = ssub.s32 %s26, %s33
      %s40 = sor.u32 %s38, %s39
      %p41 = scmp.eq.s32.totalorder %s40, 0
      %s43 = sadd.s32 %s42, 1
      %s44 = scalar_select %p41, %s42, %s43
      %p47 = pneg %p41
      %p48 = scmp.eq.s32.totalorder %s18, 3
      %p49 = por %p47, %p48
      %p50 = scmp.ne.s32.totalorder %s42, %s45
      %p51 = scmp.eq.s32.totalorder %s18, 0
      %p52 = por %p50, %p51
      %p53 = scmp.ne.s32.totalorder %s42, %s45
      %p54 = scmp.eq.s32.totalorder %s23, 3
      %p55 = por %p53, %p54
      %p56 = scmp.ne.s32.totalorder %s45, %s46
      %p57 = scmp.eq.s32.totalorder %s23, 0
      %p58 = por %p56, %p57
      %p59 = scmp.ne.s32.totalorder %s45, %s46
      %p60 = scmp.eq.s32.totalorder %s24, 3
      %p61 = por %p59, %p60
      %p63 = scmp.ne.s32.totalorder %s46, %s62
      %p64 = scmp.eq.s32.totalorder %s24, 0
      %p65 = por %p63, %p64
      %s66 = ssub.s32 %s25, %s37
      %s67 = ssub.s32 %s26, %s33
      %s68 = sor.u32 %s66, %s67
      %p69 = scmp.eq.s32.totalorder %s68, 0
      %s71 = sadd.s32 %s70, 1
      %s72 = scalar_select %p69, %s70, %s71
      %p75 = pneg %p69
      %p76 = scmp.eq.s32.totalorder %s18, 3
      %p77 = por %p75, %p76
      %p78 = scmp.ne.s32.totalorder %s70, %s73
      %p79 = scmp.eq.s32.totalorder %s18, 0
      %p80 = por %p78, %p79
      %p81 = scmp.ne.s32.totalorder %s70, %s73
      %p82 = scmp.eq.s32.totalorder %s23, 3
      %p83 = por %p81, %p82
      %p84 = scmp.ne.s32.totalorder %s73, %s74
      %p85 = scmp.eq.s32.totalorder %s23, 0
      %p86 = por %p84, %p85
      %p87 = scmp.ne.s32.totalorder %s73, %s74
      %p88 = scmp.eq.s32.totalorder %s24, 3
      %p89 = por %p87, %p88
      %p91 = scmp.ne.s32.totalorder %s74, %s90
      %p92 = scmp.eq.s32.totalorder %s24, 0
      %p93 = por %p91, %p92
      %s94 = ssub.s32 %s25, %s37
      %s95 = ssub.s32 %s26, %s33
      %s96 = sor.u32 %s94, %s95
      %p97 = scmp.eq.s32.totalorder %s96, 0
      %s99 = sadd.s32 %s98, 1
      %s100 = scalar_select %p97, %s98, %s99
      %p103 = pneg %p97
      %p104 = scmp.eq.s32.totalorder %s18, 3
      %p105 = por %p103, %p104
      %p106 = scmp.ne.s32.totalorder %s98, %s101
      %p107 = scmp.eq.s32.totalorder %s18, 0
      %p108 = por %p106, %p107
      %p109 = scmp.ne.s32.totalorder %s98, %s101
      %p110 = scmp.eq.s32.totalorder %s23, 3
      %p111 = por %p109, %p110
      %p112 = scmp.ne.s32.totalorder %s101, %s102
      %p113 = scmp.eq.s32.totalorder %s23, 0
      %p114 = por %p112, %p113
      %p115 = scmp.ne.s32.totalorder %s101, %s102
      %p116 = scmp.eq.s32.totalorder %s24, 3
      %p117 = por %p115, %p116
      %p119 = scmp.ne.s32.totalorder %s102, %s118
      %p120 = scmp.eq.s32.totalorder %s24, 0
      %p121 = por %p119, %p120
      %p122 = scmp.le.s32.totalorder 1, %s18
      %p123 = scmp.lt.s32.totalorder %s18, 5
      %p124 = pnand %p122, %p123
      %p125 = pneg %p124
      // Predicated region
      $region9: #{tpu_custom_call.1} parent=5 // pred_check
        _
      $region10: #{tpu_custom_call.1} parent=5 // pred_check_branch
        %127 = sbr.rel (%p124) target = $region12
      $region11: #{tpu_custom_call.1} parent=5 // pred_region
        %s128 = ssub.s32 %s18, 1
      $region12: #{tpu_custom_call.1} parent=5 // pred_fallthru
        _
      %p129 = scmp.lt.s32.totalorder %s18, 4
      // Predicated region
      $region13: #{tpu_custom_call.1} parent=5 // pred_check
        %p130 = pneg %p129
      $region14: #{tpu_custom_call.1} parent=5 // pred_check_branch
        %132 = sbr.rel (%p130) target = $region16
      $region15: #{tpu_custom_call.1} parent=5 // pred_region
        // Predicated region
        $region17: #{tpu_custom_call.1} parent=15 // pred_check
          %p133 = pneg %p52
        $region18: #{tpu_custom_call.1} parent=15 // pred_check_branch
          %135 = sbr.rel (%p133) target = $region20
        $region19: #{tpu_custom_call.1} parent=15 // pred_region
          %s136 = sand.u32 %s42, 1
          %s137 = scalar_lea.sflag [#allocation3], %s136
          %s138 = sand.u32 %s42, 1
          %s139 = smul.addr %s138, 48
          %s140 = scalar_lea.vmem [#allocation2], %s139
          %s141 = smul.u32 3, %s25
          %s142 = smul.u32 2, %s26
          %s144 = ssub.s32 768, 768
          %145 = vsyncadd %s137, %s144
          %s146 = smul.addr %s141, 2
          %s147 = sadd.s32 %s142, %s146
          %s148 = smul.addr %s147, 128
          %s149 = scalar_lea.hbm %s0, %s148
          %s150 = sshll.u32 %s140, 4
          %s151 = int_to_ptr.vmem [resolvable:$true] %s150
          %156 = dma.hbm_to_vmem [thread:$0]  %s149, 768, %s151, %s137, 256, 256, 16
        $region20: #{tpu_custom_call.1} parent=15 // pred_fallthru
          _
      $region16: #{tpu_custom_call.1} parent=5 // pred_fallthru
        _
      %p157 = scmp.le.s32.totalorder 1, %s18
      %p158 = scmp.lt.s32.totalorder %s18, 5
      %p159 = pnand %p157, %p158
      %p160 = pneg %p159
      // Predicated region
      $region21: #{tpu_custom_call.1} parent=5 // pred_check
        _
      $region22: #{tpu_custom_call.1} parent=5 // pred_check_branch
        %162 = sbr.rel (%p159) target = $region24
      $region23: #{tpu_custom_call.1} parent=5 // pred_region
        %s163 = ssub.s32 %s18, 1
        %s164 = sand.u32 %s45, 1
        %s165 = scalar_lea.sflag [#allocation3], %s164
        %s166 = sand.u32 %s45, 1
        %s167 = smul.addr %s166, 48
        %s168 = scalar_lea.vmem [#allocation2], %s167
        // Predicated region
        $region25: #{tpu_custom_call.1} parent=23 // pred_check
          %p169 = pneg %p58
        $region26: #{tpu_custom_call.1} parent=23 // pred_check_branch
          %171 = sbr.rel (%p169) target = $region28
        $region27: #{tpu_custom_call.1} parent=23 // pred_region
          %172 = dma.done %s165, 768
        $region28: #{tpu_custom_call.1} parent=23 // pred_fallthru
          _
        %s173 = sand.u32 %s45, 1
        %s174 = scalar_lea.sflag [#allocation3], %s173
        %s175 = sand.u32 %s45, 1
        %s176 = smul.addr %s175, 48
        %s177 = scalar_lea.vmem [#allocation2], %s176
        %p178 = pneg %p58
        %p179 = pneg %p55
        %p180 = pneg %p86
        %p181 = pneg %p83
        %s182 = sand.u32 %s73, 1
        %s183 = scalar_lea.sflag [#allocation4], %s182
        %s184 = sand.u32 %s73, 1
        %s185 = smul.addr %s184, 48
        %s186 = scalar_lea.vmem [#allocation5], %s185
        %p187 = pneg %p114
        %p188 = pneg %p111
        %s189 = sand.u32 %s101, 1
        %s190 = scalar_lea.sflag [#allocation7], %s189
        %s191 = sand.u32 %s101, 1
        %s192 = smul.addr %s191, 48
        %s193 = scalar_lea.vmem [#allocation6], %s192
        %s194 = smul.u32 3, %s27
        %s195 = smul.u32 2, %s28
        %s196 = smul.u32 3, %s27
        %s197 = smul.u32 2, %s28
        %s198 = smul.u32 3, %s27
        %s199 = smul.u32 2, %s28
        %v200 = vld [vmem:[%s168] sm:$0xff]
        %v201 = vld [vmem:[%s168 + $0x8] sm:$0xff]
        %v202 = vld [vmem:[%s168 + $0x10] sm:$0xff]
        %v203 = vld [vmem:[%s168 + $0x18] sm:$0xff]
        %v204 = vld [vmem:[%s168 + $0x20] sm:$0xff]
        %v205 = vld [vmem:[%s168 + $0x28] sm:$0xff]
        %v206 = vadd.f32 %v200, 0.050265484
        %v207 = vadd.f32 %v201, 0.050265484
        %v208 = vadd.f32 %v202, 0.050265484
        %v209 = vadd.f32 %v203, 0.050265484
        %v210 = vadd.f32 %v204, 0.050265484
        %v211 = vadd.f32 %v205, 0.050265484
        %v212 = vand.u32 2147483647, %v206
        %v213 = vrcp.pop 6.2831855
        %v214 = vmul.f32 %v212, %v213
        %v215 = vfloor.f32 %v214
        %v216 = vmul.f32 %v215, 6.2831855
        %v217 = vsub.f32 %v212, %v216
        %vm218 = vcmp.eq.f32.partialorder %v217, 6.2831855
        %v219 = vsel %vm218, 0.0, %v217
        %v220 = vand.u32 2147483647, %v219
        %v221 = vand.u32 %v206, 2147483648
        %v222 = vor.u32 %v220, %v221
        %v223 = vand.u32 2147483647, %v207
        %v224 = vrcp.pop 6.2831855
        %v225 = vmul.f32 %v223, %v224
        %v226 = vfloor.f32 %v225
        %v227 = vmul.f32 %v226, 6.2831855
        %v228 = vsub.f32 %v223, %v227
        %vm229 = vcmp.eq.f32.partialorder %v228, 6.2831855
        %v230 = vsel %vm229, 0.0, %v228
        %v231 = vand.u32 2147483647, %v230
        %v232 = vand.u32 %v207, 2147483648
        %v233 = vor.u32 %v231, %v232
        %v234 = vand.u32 2147483647, %v208
        %v235 = vrcp.pop 6.2831855
        %v236 = vmul.f32 %v234, %v235
        %v237 = vfloor.f32 %v236
        %v238 = vmul.f32 %v237, 6.2831855
        %v239 = vsub.f32 %v234, %v238
        %vm240 = vcmp.eq.f32.partialorder %v239, 6.2831855
        %v241 = vsel %vm240, 0.0, %v239
        %v242 = vand.u32 2147483647, %v241
        %v243 = vand.u32 %v208, 2147483648
        %v244 = vor.u32 %v242, %v243
        %v245 = vand.u32 2147483647, %v209
        %v246 = vrcp.pop 6.2831855
        %v247 = vmul.f32 %v245, %v246
        %v248 = vfloor.f32 %v247
        %v249 = vmul.f32 %v248, 6.2831855
        %v250 = vsub.f32 %v245, %v249
        %vm251 = vcmp.eq.f32.partialorder %v250, 6.2831855
        %v252 = vsel %vm251, 0.0, %v250
        %v253 = vand.u32 2147483647, %v252
        %v254 = vand.u32 %v209, 2147483648
        %v255 = vor.u32 %v253, %v254
        %v256 = vand.u32 2147483647, %v210
        %v257 = vrcp.pop 6.2831855
        %v258 = vmul.f32 %v256, %v257
        %v259 = vfloor.f32 %v258
        %v260 = vmul.f32 %v259, 6.2831855
        %v261 = vsub.f32 %v256, %v260
        %vm262 = vcmp.eq.f32.partialorder %v261, 6.2831855
        %v263 = vsel %vm262, 0.0, %v261
        %v264 = vand.u32 2147483647, %v263
        %v265 = vand.u32 %v210, 2147483648
        %v266 = vor.u32 %v264, %v265
        %v267 = vand.u32 2147483647, %v211
        %v268 = vrcp.pop 6.2831855
        %v269 = vmul.f32 %v267, %v268
        %v270 = vfloor.f32 %v269
        %v271 = vmul.f32 %v270, 6.2831855
        %v272 = vsub.f32 %v267, %v271
        %vm273 = vcmp.eq.f32.partialorder %v272, 6.2831855
        %v274 = vsel %vm273, 0.0, %v272
        %v275 = vand.u32 2147483647, %v274
        %v276 = vand.u32 %v211, 2147483648
        %v277 = vor.u32 %v275, %v276
        %vm278 = vcmp.ne.f32.partialorder %v222, 0.0
        %vm279 = vcmp.ne.f32.partialorder %v233, 0.0
        %vm280 = vcmp.ne.f32.partialorder %v244, 0.0
        %vm281 = vcmp.ne.f32.partialorder %v255, 0.0
        %vm282 = vcmp.ne.f32.partialorder %v266, 0.0
        %vm283 = vcmp.ne.f32.partialorder %v277, 0.0
        %vm284 = vcmp.lt.f32.partialorder %v222, 0.0
        %vm285 = vcmp.lt.f32.partialorder %v233, 0.0
        %vm286 = vcmp.lt.f32.partialorder %v244, 0.0
        %vm287 = vcmp.lt.f32.partialorder %v255, 0.0
        %vm288 = vcmp.lt.f32.partialorder %v266, 0.0
        %vm289 = vcmp.lt.f32.partialorder %v277, 0.0
        %vm290 = vmand %vm284, %vm278
        %vm291 = vmand %vm285, %vm279
        %vm292 = vmand %vm286, %vm280
        %vm293 = vmand %vm287, %vm281
        %vm294 = vmand %vm288, %vm282
        %vm295 = vmand %vm289, %vm283
        %v296 = vadd.f32 %v222, 6.2831855
        %v297 = vadd.f32 %v233, 6.2831855
        %v298 = vadd.f32 %v244, 6.2831855
        %v299 = vadd.f32 %v255, 6.2831855
        %v300 = vadd.f32 %v266, 6.2831855
        %v301 = vadd.f32 %v277, 6.2831855
        %v302 = vsel %vm290, %v296, %v222
        %v303 = vsel %vm291, %v297, %v233
        %v304 = vsel %vm292, %v298, %v244
        %v305 = vsel %vm293, %v299, %v255
        %v306 = vsel %vm294, %v300, %v266
        %v307 = vsel %vm295, %v301, %v277
        %308 = vst [vmem:[%s186] sm:$0xff] %v302
        %309 = vst [vmem:[%s186 + $0x8] sm:$0xff] %v303
        %310 = vst [vmem:[%s186 + $0x10] sm:$0xff] %v304
        %311 = vst [vmem:[%s186 + $0x18] sm:$0xff] %v305
        %312 = vst [vmem:[%s186 + $0x20] sm:$0xff] %v306
        %313 = vst [vmem:[%s186 + $0x28] sm:$0xff] %v307
        %v314 = vand.u32 2147483647, %v302
        %vm315 = vcmp.le.f32.partialorder %v314, 0.7853982
        %vm316 = vcmp.lt.s32.totalorder %v302, 0
        %v317 = vand.u32 %v302, 2139095040
        %v318 = vshrl.u32 %v317, 23
        %v319 = vsub.s32 %v318, 127
        %v320 = vand.u32 2147483647, %v302
        %v321 = vand.u32 %v320, 8388607
        %v322 = vor.u32 %v321, 8388608
        %v323 = vsub.s32 0, %v322
        %v324 = vadd.s32 %v319, 1
        %vm325 = vcmp.gt.s32.totalorder %v324, 0
        %v326 = vsel %vm325, %v324, 0
        %v327 = vshrl.u32 %v326, 5
        %v328 = vand.u32 %v326, 31
        %v329 = vsub.s32 32, %v328
        %v330 = vshrl.u32 683565275, %v329
        %v331 = vshll.u32 683565275, %v328
        %v332 = vshrl.u32 2475754826, %v329
        %v333 = vor.u32 %v331, %v332
        %v334 = vshll.u32 2475754826, %v328
        %v335 = vshrl.u32 2131351028, %v329
        %v336 = vor.u32 %v334, %v335
        %v337 = vshll.u32 2131351028, %v328
        %v338 = vshrl.u32 2102212464, %v329
        %v339 = vor.u32 %v337, %v338
        %v340 = vshll.u32 2102212464, %v328
        %v341 = vshrl.u32 920167782, %v329
        %v342 = vor.u32 %v340, %v341
        %v343 = vshll.u32 920167782, %v328
        %v344 = vshrl.u32 1326507024, %v329
        %v345 = vor.u32 %v343, %v344
        %vm346 = vcmp.lt.s32.totalorder %v327, 1
        %vm347 = vcmp.lt.s32.totalorder %v327, 2
        %vm348 = vcmp.lt.s32.totalorder %v327, 3
        %vm349 = vcmp.lt.s32.totalorder %v327, 4
        %v350 = vsel %vm346, %v330, %v333
        %v351 = vsel %vm349, %v339, 2102212464
        %v352 = vsel %vm348, %v336, %v351
        %v353 = vsel %vm347, %v350, %v352
        %v354 = vsel %vm346, %v333, %v336
        %v355 = vsel %vm349, %v342, 920167782
        %v356 = vsel %vm348, %v339, %v355
        %v357 = vsel %vm347, %v354, %v356
        %v358 = vsel %vm346, %v336, %v339
        %v359 = vsel %vm349, %v345, 1326507024
        %v360 = vsel %vm348, %v342, %v359
        %v361 = vsel %vm347, %v358, %v360
        %v362 = vshll.u32 %v322, 8
        %v363 = vmul.u32.u64.compose %v362, %v361
        %v364 = vextract.low.u32 %v363
        %v365 = vextract.high.u32 %v363
        %v366 = vmul.u32.u64.compose %v362, %v357
        %v367 = vextract.low.u32 %v366
        %v368 = vextract.high.u32 %v366
        %v369 = vmul.u32 %v362, %v353
        %v370 = vadd.s32 %v365, %v367
        %vm371 = vc.u32 %v365, %v367
        %v372 = vadd.s32 %v368, 1
        %v373 = vsel %vm371, %v372, %v368
        %v374 = vadd.s32 %v369, %v373
        %v375 = vadd.s32 %v374, 536870912
        %v376 = vshrl.u32 %v375, 30
        %v377 = vshll.u32 %v376, 30
        %v378 = vsub.s32 %v374, %v377
        %vm379 = vcmp.lt.s32.totalorder %v378, 0
        %v380 = vsub.s32 0, %v378
        %v381 = vsel %vm379, %v380, %v378
        %v382 = vclz %v381
        %v383 = vsub.s32 %v382, 2
        %vm384 = vcmp.gt.s32.totalorder 0, %v383
        %v385 = vsel %vm384, 0, %v383
        %v386 = vsub.s32 32, %v385
        %v387 = vshll.u32 %v378, %v385
        %v388 = vshrl.u32 %v370, %v386
        %v389 = vor.u32 %v387, %v388
        %v390 = vsub.s32 4294967266, %v385
        %v391 = vadd.s32 %v390, 127
        %v392 = vshll.u32 %v391, 23
        %v393 = vor.u32 4788187, %v392
        %v394 = vand.u32 2147483647, %v393
        %v396 = vcvt.s32.f32 %v389
        %v397 = vmul.f32 %v396, %v394
        %v398 = vxor.u32 %v397, 2147483648
        %v399 = vsel %vm316, %v398, %v397
        %v400 = vsub.s32 4, %v376
        %v401 = vsel %vm316, %v400, %v376
        %v402 = vsel %vm315, %v302, %v399
        %v403 = vsel %vm315, 0, %v401
        %v404 = vcosq.f32.pop %v402
        %v405 = vsinq.f32.pop %v402
        %vm406 = vweird.f32 %v302
        %v407 = vand.u32 %v403, 3
        %vm408 = vcmp.lt.s32.totalorder %v407, 2
        %vm409 = vcmp.eq.s32.totalorder %v407, 0
        %v410 = vxor.u32 %v405, 2147483648
        %v411 = vsel %vm409, %v404, %v410
        %vm412 = vcmp.eq.s32.totalorder %v407, 2
        %v413 = vxor.u32 %v404, 2147483648
        %v414 = vsel %vm412, %v413, %v405
        %v415 = vsel %vm408, %v411, %v414
        %v416 = vsel %vm406, nan, %v415
        %v417 = vand.u32 2147483647, %v303
        %vm418 = vcmp.le.f32.partialorder %v417, 0.7853982
        %vm419 = vcmp.lt.s32.totalorder %v303, 0
        %v420 = vand.u32 %v303, 2139095040
        %v421 = vshrl.u32 %v420, 23
        %v422 = vsub.s32 %v421, 127
        %v423 = vand.u32 2147483647, %v303
        %v424 = vand.u32 %v423, 8388607
        %v425 = vor.u32 %v424, 8388608
        %v426 = vsub.s32 0, %v425
        %v427 = vadd.s32 %v422, 1
        %vm428 = vcmp.gt.s32.totalorder %v427, 0
        %v429 = vsel %vm428, %v427, 0
        %v430 = vshrl.u32 %v429, 5
        %v431 = vand.u32 %v429, 31
        %v432 = vsub.s32 32, %v431
        %v433 = vshrl.u32 683565275, %v432
        %v434 = vshll.u32 683565275, %v431
        %v435 = vshrl.u32 2475754826, %v432
        %v436 = vor.u32 %v434, %v435
        %v437 = vshll.u32 2475754826, %v431
        %v438 = vshrl.u32 2131351028, %v432
        %v439 = vor.u32 %v437, %v438
        %v440 = vshll.u32 2131351028, %v431
        %v441 = vshrl.u32 2102212464, %v432
        %v442 = vor.u32 %v440, %v441
        %v443 = vshll.u32 2102212464, %v431
        %v444 = vshrl.u32 920167782, %v432
        %v445 = vor.u32 %v443, %v444
        %v446 = vshll.u32 920167782, %v431
        %v447 = vshrl.u32 1326507024, %v432
        %v448 = vor.u32 %v446, %v447
        %vm449 = vcmp.lt.s32.totalorder %v430, 1
        %vm450 = vcmp.lt.s32.totalorder %v430, 2
        %vm451 = vcmp.lt.s32.totalorder %v430, 3
        %vm452 = vcmp.lt.s32.totalorder %v430, 4
        %v453 = vsel %vm449, %v433, %v436
        %v454 = vsel %vm452, %v442, 2102212464
        %v455 = vsel %vm451, %v439, %v454
        %v456 = vsel %vm450, %v453, %v455
        %v457 = vsel %vm449, %v436, %v439
        %v458 = vsel %vm452, %v445, 920167782
        %v459 = vsel %vm451, %v442, %v458
        %v460 = vsel %vm450, %v457, %v459
        %v461 = vsel %vm449, %v439, %v442
        %v462 = vsel %vm452, %v448, 1326507024
        %v463 = vsel %vm451, %v445, %v462
        %v464 = vsel %vm450, %v461, %v463
        %v465 = vshll.u32 %v425, 8
        %v466 = vmul.u32.u64.compose %v465, %v464
        %v467 = vextract.low.u32 %v466
        %v468 = vextract.high.u32 %v466
        %v469 = vmul.u32.u64.compose %v465, %v460
        %v470 = vextract.low.u32 %v469
        %v471 = vextract.high.u32 %v469
        %v472 = vmul.u32 %v465, %v456
        %v473 = vadd.s32 %v468, %v470
        %vm474 = vc.u32 %v468, %v470
        %v475 = vadd.s32 %v471, 1
        %v476 = vsel %vm474, %v475, %v471
        %v477 = vadd.s32 %v472, %v476
        %v478 = vadd.s32 %v477, 536870912
        %v479 = vshrl.u32 %v478, 30
        %v480 = vshll.u32 %v479, 30
        %v481 = vsub.s32 %v477, %v480
        %vm482 = vcmp.lt.s32.totalorder %v481, 0
        %v483 = vsub.s32 0, %v481
        %v484 = vsel %vm482, %v483, %v481
        %v485 = vclz %v484
        %v486 = vsub.s32 %v485, 2
        %vm487 = vcmp.gt.s32.totalorder 0, %v486
        %v488 = vsel %vm487, 0, %v486
        %v489 = vsub.s32 32, %v488
        %v490 = vshll.u32 %v481, %v488
        %v491 = vshrl.u32 %v473, %v489
        %v492 = vor.u32 %v490, %v491
        %v493 = vsub.s32 4294967266, %v488
        %v494 = vadd.s32 %v493, 127
        %v495 = vshll.u32 %v494, 23
        %v496 = vor.u32 4788187, %v495
        %v497 = vand.u32 2147483647, %v496
        %v499 = vcvt.s32.f32 %v492
        %v500 = vmul.f32 %v499, %v497
        %v501 = vxor.u32 %v500, 2147483648
        %v502 = vsel %vm419, %v501, %v500
        %v503 = vsub.s32 4, %v479
        %v504 = vsel %vm419, %v503, %v479
        %v505 = vsel %vm418, %v303, %v502
        %v506 = vsel %vm418, 0, %v504
        %v507 = vcosq.f32.pop %v505
        %v508 = vsinq.f32.pop %v505
        %vm509 = vweird.f32 %v303
        %v510 = vand.u32 %v506, 3
        %vm511 = vcmp.lt.s32.totalorder %v510, 2
        %vm512 = vcmp.eq.s32.totalorder %v510, 0
        %v513 = vxor.u32 %v508, 2147483648
        %v514 = vsel %vm512, %v507, %v513
        %vm515 = vcmp.eq.s32.totalorder %v510, 2
        %v516 = vxor.u32 %v507, 2147483648
        %v517 = vsel %vm515, %v516, %v508
        %v518 = vsel %vm511, %v514, %v517
        %v519 = vsel %vm509, nan, %v518
        %v520 = vand.u32 2147483647, %v304
        %vm521 = vcmp.le.f32.partialorder %v520, 0.7853982
        %vm522 = vcmp.lt.s32.totalorder %v304, 0
        %v523 = vand.u32 %v304, 2139095040
        %v524 = vshrl.u32 %v523, 23
        %v525 = vsub.s32 %v524, 127
        %v526 = vand.u32 2147483647, %v304
        %v527 = vand.u32 %v526, 8388607
        %v528 = vor.u32 %v527, 8388608
        %v529 = vsub.s32 0, %v528
        %v530 = vadd.s32 %v525, 1
        %vm531 = vcmp.gt.s32.totalorder %v530, 0
        %v532 = vsel %vm531, %v530, 0
        %v533 = vshrl.u32 %v532, 5
        %v534 = vand.u32 %v532, 31
        %v535 = vsub.s32 32, %v534
        %v536 = vshrl.u32 683565275, %v535
        %v537 = vshll.u32 683565275, %v534
        %v538 = vshrl.u32 2475754826, %v535
        %v539 = vor.u32 %v537, %v538
        %v540 = vshll.u32 2475754826, %v534
        %v541 = vshrl.u32 2131351028, %v535
        %v542 = vor.u32 %v540, %v541
        %v543 = vshll.u32 2131351028, %v534
        %v544 = vshrl.u32 2102212464, %v535
        %v545 = vor.u32 %v543, %v544
        %v546 = vshll.u32 2102212464, %v534
        %v547 = vshrl.u32 920167782, %v535
        %v548 = vor.u32 %v546, %v547
        %v549 = vshll.u32 920167782, %v534
        %v550 = vshrl.u32 1326507024, %v535
        %v551 = vor.u32 %v549, %v550
        %vm552 = vcmp.lt.s32.totalorder %v533, 1
        %vm553 = vcmp.lt.s32.totalorder %v533, 2
        %vm554 = vcmp.lt.s32.totalorder %v533, 3
        %vm555 = vcmp.lt.s32.totalorder %v533, 4
        %v556 = vsel %vm552, %v536, %v539
        %v557 = vsel %vm555, %v545, 2102212464
        %v558 = vsel %vm554, %v542, %v557
        %v559 = vsel %vm553, %v556, %v558
        %v560 = vsel %vm552, %v539, %v542
        %v561 = vsel %vm555, %v548, 920167782
        %v562 = vsel %vm554, %v545, %v561
        %v563 = vsel %vm553, %v560, %v562
        %v564 = vsel %vm552, %v542, %v545
        %v565 = vsel %vm555, %v551, 1326507024
        %v566 = vsel %vm554, %v548, %v565
        %v567 = vsel %vm553, %v564, %v566
        %v568 = vshll.u32 %v528, 8
        %v569 = vmul.u32.u64.compose %v568, %v567
        %v570 = vextract.low.u32 %v569
        %v571 = vextract.high.u32 %v569
        %v572 = vmul.u32.u64.compose %v568, %v563
        %v573 = vextract.low.u32 %v572
        %v574 = vextract.high.u32 %v572
        %v575 = vmul.u32 %v568, %v559
        %v576 = vadd.s32 %v571, %v573
        %vm577 = vc.u32 %v571, %v573
        %v578 = vadd.s32 %v574, 1
        %v579 = vsel %vm577, %v578, %v574
        %v580 = vadd.s32 %v575, %v579
        %v581 = vadd.s32 %v580, 536870912
        %v582 = vshrl.u32 %v581, 30
        %v583 = vshll.u32 %v582, 30
        %v584 = vsub.s32 %v580, %v583
        %vm585 = vcmp.lt.s32.totalorder %v584, 0
        %v586 = vsub.s32 0, %v584
        %v587 = vsel %vm585, %v586, %v584
        %v588 = vclz %v587
        %v589 = vsub.s32 %v588, 2
        %vm590 = vcmp.gt.s32.totalorder 0, %v589
        %v591 = vsel %vm590, 0, %v589
        %v592 = vsub.s32 32, %v591
        %v593 = vshll.u32 %v584, %v591
        %v594 = vshrl.u32 %v576, %v592
        %v595 = vor.u32 %v593, %v594
        %v596 = vsub.s32 4294967266, %v591
        %v597 = vadd.s32 %v596, 127
        %v598 = vshll.u32 %v597, 23
        %v599 = vor.u32 4788187, %v598
        %v600 = vand.u32 2147483647, %v599
        %v602 = vcvt.s32.f32 %v595
        %v603 = vmul.f32 %v602, %v600
        %v604 = vxor.u32 %v603, 2147483648
        %v605 = vsel %vm522, %v604, %v603
        %v606 = vsub.s32 4, %v582
        %v607 = vsel %vm522, %v606, %v582
        %v608 = vsel %vm521, %v304, %v605
        %v609 = vsel %vm521, 0, %v607
        %v610 = vcosq.f32.pop %v608
        %v611 = vsinq.f32.pop %v608
        %vm612 = vweird.f32 %v304
        %v613 = vand.u32 %v609, 3
        %vm614 = vcmp.lt.s32.totalorder %v613, 2
        %vm615 = vcmp.eq.s32.totalorder %v613, 0
        %v616 = vxor.u32 %v611, 2147483648
        %v617 = vsel %vm615, %v610, %v616
        %vm618 = vcmp.eq.s32.totalorder %v613, 2
        %v619 = vxor.u32 %v610, 2147483648
        %v620 = vsel %vm618, %v619, %v611
        %v621 = vsel %vm614, %v617, %v620
        %v622 = vsel %vm612, nan, %v621
        %v623 = vand.u32 2147483647, %v305
        %vm624 = vcmp.le.f32.partialorder %v623, 0.7853982
        %vm625 = vcmp.lt.s32.totalorder %v305, 0
        %v626 = vand.u32 %v305, 2139095040
        %v627 = vshrl.u32 %v626, 23
        %v628 = vsub.s32 %v627, 127
        %v629 = vand.u32 2147483647, %v305
        %v630 = vand.u32 %v629, 8388607
        %v631 = vor.u32 %v630, 8388608
        %v632 = vsub.s32 0, %v631
        %v633 = vadd.s32 %v628, 1
        %vm634 = vcmp.gt.s32.totalorder %v633, 0
        %v635 = vsel %vm634, %v633, 0
        %v636 = vshrl.u32 %v635, 5
        %v637 = vand.u32 %v635, 31
        %v638 = vsub.s32 32, %v637
        %v639 = vshrl.u32 683565275, %v638
        %v640 = vshll.u32 683565275, %v637
        %v641 = vshrl.u32 2475754826, %v638
        %v642 = vor.u32 %v640, %v641
        %v643 = vshll.u32 2475754826, %v637
        %v644 = vshrl.u32 2131351028, %v638
        %v645 = vor.u32 %v643, %v644
        %v646 = vshll.u32 2131351028, %v637
        %v647 = vshrl.u32 2102212464, %v638
        %v648 = vor.u32 %v646, %v647
        %v649 = vshll.u32 2102212464, %v637
        %v650 = vshrl.u32 920167782, %v638
        %v651 = vor.u32 %v649, %v650
        %v652 = vshll.u32 920167782, %v637
        %v653 = vshrl.u32 1326507024, %v638
        %v654 = vor.u32 %v652, %v653
        %vm655 = vcmp.lt.s32.totalorder %v636, 1
        %vm656 = vcmp.lt.s32.totalorder %v636, 2
        %vm657 = vcmp.lt.s32.totalorder %v636, 3
        %vm658 = vcmp.lt.s32.totalorder %v636, 4
        %v659 = vsel %vm655, %v639, %v642
        %v660 = vsel %vm658, %v648, 2102212464
        %v661 = vsel %vm657, %v645, %v660
        %v662 = vsel %vm656, %v659, %v661
        %v663 = vsel %vm655, %v642, %v645
        %v664 = vsel %vm658, %v651, 920167782
        %v665 = vsel %vm657, %v648, %v664
        %v666 = vsel %vm656, %v663, %v665
        %v667 = vsel %vm655, %v645, %v648
        %v668 = vsel %vm658, %v654, 1326507024
        %v669 = vsel %vm657, %v651, %v668
        %v670 = vsel %vm656, %v667, %v669
        %v671 = vshll.u32 %v631, 8
        %v672 = vmul.u32.u64.compose %v671, %v670
        %v673 = vextract.low.u32 %v672
        %v674 = vextract.high.u32 %v672
        %v675 = vmul.u32.u64.compose %v671, %v666
        %v676 = vextract.low.u32 %v675
        %v677 = vextract.high.u32 %v675
        %v678 = vmul.u32 %v671, %v662
        %v679 = vadd.s32 %v674, %v676
        %vm680 = vc.u32 %v674, %v676
        %v681 = vadd.s32 %v677, 1
        %v682 = vsel %vm680, %v681, %v677
        %v683 = vadd.s32 %v678, %v682
        %v684 = vadd.s32 %v683, 536870912
        %v685 = vshrl.u32 %v684, 30
        %v686 = vshll.u32 %v685, 30
        %v687 = vsub.s32 %v683, %v686
        %vm688 = vcmp.lt.s32.totalorder %v687, 0
        %v689 = vsub.s32 0, %v687
        %v690 = vsel %vm688, %v689, %v687
        %v691 = vclz %v690
        %v692 = vsub.s32 %v691, 2
        %vm693 = vcmp.gt.s32.totalorder 0, %v692
        %v694 = vsel %vm693, 0, %v692
        %v695 = vsub.s32 32, %v694
        %v696 = vshll.u32 %v687, %v694
        %v697 = vshrl.u32 %v679, %v695
        %v698 = vor.u32 %v696, %v697
        %v699 = vsub.s32 4294967266, %v694
        %v700 = vadd.s32 %v699, 127
        %v701 = vshll.u32 %v700, 23
        %v702 = vor.u32 4788187, %v701
        %v703 = vand.u32 2147483647, %v702
        %v705 = vcvt.s32.f32 %v698
        %v706 = vmul.f32 %v705, %v703
        %v707 = vxor.u32 %v706, 2147483648
        %v708 = vsel %vm625, %v707, %v706
        %v709 = vsub.s32 4, %v685
        %v710 = vsel %vm625, %v709, %v685
        %v711 = vsel %vm624, %v305, %v708
        %v712 = vsel %vm624, 0, %v710
        %v713 = vcosq.f32.pop %v711
        %v714 = vsinq.f32.pop %v711
        %vm715 = vweird.f32 %v305
        %v716 = vand.u32 %v712, 3
        %vm717 = vcmp.lt.s32.totalorder %v716, 2
        %vm718 = vcmp.eq.s32.totalorder %v716, 0
        %v719 = vxor.u32 %v714, 2147483648
        %v720 = vsel %vm718, %v713, %v719
        %vm721 = vcmp.eq.s32.totalorder %v716, 2
        %v722 = vxor.u32 %v713, 2147483648
        %v723 = vsel %vm721, %v722, %v714
        %v724 = vsel %vm717, %v720, %v723
        %v725 = vsel %vm715, nan, %v724
        %v726 = vand.u32 2147483647, %v306
        %vm727 = vcmp.le.f32.partialorder %v726, 0.7853982
        %vm728 = vcmp.lt.s32.totalorder %v306, 0
        %v729 = vand.u32 %v306, 2139095040
        %v730 = vshrl.u32 %v729, 23
        %v731 = vsub.s32 %v730, 127
        %v732 = vand.u32 2147483647, %v306
        %v733 = vand.u32 %v732, 8388607
        %v734 = vor.u32 %v733, 8388608
        %v735 = vsub.s32 0, %v734
        %v736 = vadd.s32 %v731, 1
        %vm737 = vcmp.gt.s32.totalorder %v736, 0
        %v738 = vsel %vm737, %v736, 0
        %v739 = vshrl.u32 %v738, 5
        %v740 = vand.u32 %v738, 31
        %v741 = vsub.s32 32, %v740
        %v742 = vshrl.u32 683565275, %v741
        %v743 = vshll.u32 683565275, %v740
        %v744 = vshrl.u32 2475754826, %v741
        %v745 = vor.u32 %v743, %v744
        %v746 = vshll.u32 2475754826, %v740
        %v747 = vshrl.u32 2131351028, %v741
        %v748 = vor.u32 %v746, %v747
        %v749 = vshll.u32 2131351028, %v740
        %v750 = vshrl.u32 2102212464, %v741
        %v751 = vor.u32 %v749, %v750
        %v752 = vshll.u32 2102212464, %v740
        %v753 = vshrl.u32 920167782, %v741
        %v754 = vor.u32 %v752, %v753
        %v755 = vshll.u32 920167782, %v740
        %v756 = vshrl.u32 1326507024, %v741
        %v757 = vor.u32 %v755, %v756
        %vm758 = vcmp.lt.s32.totalorder %v739, 1
        %vm759 = vcmp.lt.s32.totalorder %v739, 2
        %vm760 = vcmp.lt.s32.totalorder %v739, 3
        %vm761 = vcmp.lt.s32.totalorder %v739, 4
        %v762 = vsel %vm758, %v742, %v745
        %v763 = vsel %vm761, %v751, 2102212464
        %v764 = vsel %vm760, %v748, %v763
        %v765 = vsel %vm759, %v762, %v764
        %v766 = vsel %vm758, %v745, %v748
        %v767 = vsel %vm761, %v754, 920167782
        %v768 = vsel %vm760, %v751, %v767
        %v769 = vsel %vm759, %v766, %v768
        %v770 = vsel %vm758, %v748, %v751
        %v771 = vsel %vm761, %v757, 1326507024
        %v772 = vsel %vm760, %v754, %v771
        %v773 = vsel %vm759, %v770, %v772
        %v774 = vshll.u32 %v734, 8
        %v775 = vmul.u32.u64.compose %v774, %v773
        %v776 = vextract.low.u32 %v775
        %v777 = vextract.high.u32 %v775
        %v778 = vmul.u32.u64.compose %v774, %v769
        %v779 = vextract.low.u32 %v778
        %v780 = vextract.high.u32 %v778
        %v781 = vmul.u32 %v774, %v765
        %v782 = vadd.s32 %v777, %v779
        %vm783 = vc.u32 %v777, %v779
        %v784 = vadd.s32 %v780, 1
        %v785 = vsel %vm783, %v784, %v780
        %v786 = vadd.s32 %v781, %v785
        %v787 = vadd.s32 %v786, 536870912
        %v788 = vshrl.u32 %v787, 30
        %v789 = vshll.u32 %v788, 30
        %v790 = vsub.s32 %v786, %v789
        %vm791 = vcmp.lt.s32.totalorder %v790, 0
        %v792 = vsub.s32 0, %v790
        %v793 = vsel %vm791, %v792, %v790
        %v794 = vclz %v793
        %v795 = vsub.s32 %v794, 2
        %vm796 = vcmp.gt.s32.totalorder 0, %v795
        %v797 = vsel %vm796, 0, %v795
        %v798 = vsub.s32 32, %v797
        %v799 = vshll.u32 %v790, %v797
        %v800 = vshrl.u32 %v782, %v798
        %v801 = vor.u32 %v799, %v800
        %v802 = vsub.s32 4294967266, %v797
        %v803 = vadd.s32 %v802, 127
        %v804 = vshll.u32 %v803, 23
        %v805 = vor.u32 4788187, %v804
        %v806 = vand.u32 2147483647, %v805
        %v808 = vcvt.s32.f32 %v801
        %v809 = vmul.f32 %v808, %v806
        %v810 = vxor.u32 %v809, 2147483648
        %v811 = vsel %vm728, %v810, %v809
        %v812 = vsub.s32 4, %v788
        %v813 = vsel %vm728, %v812, %v788
        %v814 = vsel %vm727, %v306, %v811
        %v815 = vsel %vm727, 0, %v813
        %v816 = vcosq.f32.pop %v814
        %v817 = vsinq.f32.pop %v814
        %vm818 = vweird.f32 %v306
        %v819 = vand.u32 %v815, 3
        %vm820 = vcmp.lt.s32.totalorder %v819, 2
        %vm821 = vcmp.eq.s32.totalorder %v819, 0
        %v822 = vxor.u32 %v817, 2147483648
        %v823 = vsel %vm821, %v816, %v822
        %vm824 = vcmp.eq.s32.totalorder %v819, 2
        %v825 = vxor.u32 %v816, 2147483648
        %v826 = vsel %vm824, %v825, %v817
        %v827 = vsel %vm820, %v823, %v826
        %v828 = vsel %vm818, nan, %v827
        %v829 = vand.u32 2147483647, %v307
        %vm830 = vcmp.le.f32.partialorder %v829, 0.7853982
        %vm831 = vcmp.lt.s32.totalorder %v307, 0
        %v832 = vand.u32 %v307, 2139095040
        %v833 = vshrl.u32 %v832, 23
        %v834 = vsub.s32 %v833, 127
        %v835 = vand.u32 2147483647, %v307
        %v836 = vand.u32 %v835, 8388607
        %v837 = vor.u32 %v836, 8388608
        %v838 = vsub.s32 0, %v837
        %v839 = vadd.s32 %v834, 1
        %vm840 = vcmp.gt.s32.totalorder %v839, 0
        %v841 = vsel %vm840, %v839, 0
        %v842 = vshrl.u32 %v841, 5
        %v843 = vand.u32 %v841, 31
        %v844 = vsub.s32 32, %v843
        %v845 = vshrl.u32 683565275, %v844
        %v846 = vshll.u32 683565275, %v843
        %v847 = vshrl.u32 2475754826, %v844
        %v848 = vor.u32 %v846, %v847
        %v849 = vshll.u32 2475754826, %v843
        %v850 = vshrl.u32 2131351028, %v844
        %v851 = vor.u32 %v849, %v850
        %v852 = vshll.u32 2131351028, %v843
        %v853 = vshrl.u32 2102212464, %v844
        %v854 = vor.u32 %v852, %v853
        %v855 = vshll.u32 2102212464, %v843
        %v856 = vshrl.u32 920167782, %v844
        %v857 = vor.u32 %v855, %v856
        %v858 = vshll.u32 920167782, %v843
        %v859 = vshrl.u32 1326507024, %v844
        %v860 = vor.u32 %v858, %v859
        %vm861 = vcmp.lt.s32.totalorder %v842, 1
        %vm862 = vcmp.lt.s32.totalorder %v842, 2
        %vm863 = vcmp.lt.s32.totalorder %v842, 3
        %vm864 = vcmp.lt.s32.totalorder %v842, 4
        %v865 = vsel %vm861, %v845, %v848
        %v866 = vsel %vm864, %v854, 2102212464
        %v867 = vsel %vm863, %v851, %v866
        %v868 = vsel %vm862, %v865, %v867
        %v869 = vsel %vm861, %v848, %v851
        %v870 = vsel %vm864, %v857, 920167782
        %v871 = vsel %vm863, %v854, %v870
        %v872 = vsel %vm862, %v869, %v871
        %v873 = vsel %vm861, %v851, %v854
        %v874 = vsel %vm864, %v860, 1326507024
        %v875 = vsel %vm863, %v857, %v874
        %v876 = vsel %vm862, %v873, %v875
        %v877 = vshll.u32 %v837, 8
        %v878 = vmul.u32.u64.compose %v877, %v876
        %v879 = vextract.low.u32 %v878
        %v880 = vextract.high.u32 %v878
        %v881 = vmul.u32.u64.compose %v877, %v872
        %v882 = vextract.low.u32 %v881
        %v883 = vextract.high.u32 %v881
        %v884 = vmul.u32 %v877, %v868
        %v885 = vadd.s32 %v880, %v882
        %vm886 = vc.u32 %v880, %v882
        %v887 = vadd.s32 %v883, 1
        %v888 = vsel %vm886, %v887, %v883
        %v889 = vadd.s32 %v884, %v888
        %v890 = vadd.s32 %v889, 536870912
        %v891 = vshrl.u32 %v890, 30
        %v892 = vshll.u32 %v891, 30
        %v893 = vsub.s32 %v889, %v892
        %vm894 = vcmp.lt.s32.totalorder %v893, 0
        %v895 = vsub.s32 0, %v893
        %v896 = vsel %vm894, %v895, %v893
        %v897 = vclz %v896
        %v898 = vsub.s32 %v897, 2
        %vm899 = vcmp.gt.s32.totalorder 0, %v898
        %v900 = vsel %vm899, 0, %v898
        %v901 = vsub.s32 32, %v900
        %v902 = vshll.u32 %v893, %v900
        %v903 = vshrl.u32 %v885, %v901
        %v904 = vor.u32 %v902, %v903
        %v905 = vsub.s32 4294967266, %v900
        %v906 = vadd.s32 %v905, 127
        %v907 = vshll.u32 %v906, 23
        %v908 = vor.u32 4788187, %v907
        %v909 = vand.u32 2147483647, %v908
        %v911 = vcvt.s32.f32 %v904
        %v912 = vmul.f32 %v911, %v909
        %v913 = vxor.u32 %v912, 2147483648
        %v914 = vsel %vm831, %v913, %v912
        %v915 = vsub.s32 4, %v891
        %v916 = vsel %vm831, %v915, %v891
        %v917 = vsel %vm830, %v307, %v914
        %v918 = vsel %vm830, 0, %v916
        %v919 = vcosq.f32.pop %v917
        %v920 = vsinq.f32.pop %v917
        %vm921 = vweird.f32 %v307
        %v922 = vand.u32 %v918, 3
        %vm923 = vcmp.lt.s32.totalorder %v922, 2
        %vm924 = vcmp.eq.s32.totalorder %v922, 0
        %v925 = vxor.u32 %v920, 2147483648
        %v926 = vsel %vm924, %v919, %v925
        %vm927 = vcmp.eq.s32.totalorder %v922, 2
        %v928 = vxor.u32 %v919, 2147483648
        %v929 = vsel %vm927, %v928, %v920
        %v930 = vsel %vm923, %v926, %v929
        %v931 = vsel %vm921, nan, %v930
        %932 = vst [vmem:[%s193] sm:$0xff] %v416
        %933 = vst [vmem:[%s193 + $0x8] sm:$0xff] %v519
        %934 = vst [vmem:[%s193 + $0x10] sm:$0xff] %v622
        %935 = vst [vmem:[%s193 + $0x18] sm:$0xff] %v725
        %936 = vst [vmem:[%s193 + $0x20] sm:$0xff] %v828
        %937 = vst [vmem:[%s193 + $0x28] sm:$0xff] %v931
        %s938 = sand.u32 %s73, 1
        %s939 = scalar_lea.sflag [#allocation4], %s938
        %s940 = sand.u32 %s73, 1
        %s941 = smul.addr %s940, 48
        %s942 = scalar_lea.vmem [#allocation5], %s941
        %s943 = sand.u32 %s101, 1
        %s944 = scalar_lea.sflag [#allocation7], %s943
        %s945 = sand.u32 %s101, 1
        %s946 = smul.addr %s945, 48
        %s947 = scalar_lea.vmem [#allocation6], %s946
        // Predicated region
        $region29: #{tpu_custom_call.1} parent=23 // pred_check
          %p948 = pneg %p83
        $region30: #{tpu_custom_call.1} parent=23 // pred_check_branch
          %950 = sbr.rel (%p948) target = $region32
        $region31: #{tpu_custom_call.1} parent=23 // pred_region
          %s951 = smul.u32 3, %s27
          %s952 = smul.u32 2, %s28
          %s954 = ssub.s32 768, 768
          %955 = vsyncadd %s939, %s954
          %s956 = smul.addr %s951, 2
          %s957 = sadd.s32 %s952, %s956
          %s958 = smul.addr %s957, 128
          %s959 = scalar_lea.hbm %s1, %s958
          %s960 = sshll.u32 %s942, 4
          %s961 = int_to_ptr.vmem [resolvable:$true] %s960
          %966 = dma.vmem_to_hbm [thread:$0]  %s961, 768, %s959, %s939, 256, 256, 16
        $region32: #{tpu_custom_call.1} parent=23 // pred_fallthru
          _
        // Predicated region
        $region33: #{tpu_custom_call.1} parent=23 // pred_check
          %p967 = pneg %p111
        $region34: #{tpu_custom_call.1} parent=23 // pred_check_branch
          %969 = sbr.rel (%p967) target = $region36
        $region35: #{tpu_custom_call.1} parent=23 // pred_region
          %s970 = smul.u32 3, %s27
          %s971 = smul.u32 2, %s28
          %s973 = ssub.s32 768, 768
          %974 = vsyncadd %s944, %s973
          %s975 = smul.addr %s970, 2
          %s976 = sadd.s32 %s971, %s975
          %s977 = smul.addr %s976, 128
          %s978 = scalar_lea.hbm %s2, %s977
          %s979 = sshll.u32 %s947, 4
          %s980 = int_to_ptr.vmem [resolvable:$true] %s979
          %985 = dma.vmem_to_hbm [thread:$0]  %s980, 768, %s978, %s944, 256, 256, 16
        $region36: #{tpu_custom_call.1} parent=23 // pred_fallthru
          _
      $region24: #{tpu_custom_call.1} parent=5 // pred_fallthru
        _
      %p986 = scmp.le.s32.totalorder 2, %s18
      // Predicated region
      $region37: #{tpu_custom_call.1} parent=5 // pred_check
        %p987 = pneg %p986
      $region38: #{tpu_custom_call.1} parent=5 // pred_check_branch
        %989 = sbr.rel (%p987) target = $region40
      $region39: #{tpu_custom_call.1} parent=5 // pred_region
        %s990 = ssub.s32 %s18, 2
        // Predicated region
        $region41: #{tpu_custom_call.1} parent=39 // pred_check
          %p991 = pneg %p89
        $region42: #{tpu_custom_call.1} parent=39 // pred_check_branch
          %993 = sbr.rel (%p991) target = $region44
        $region43: #{tpu_custom_call.1} parent=39 // pred_region
          %s994 = sand.u32 %s74, 1
          %s995 = scalar_lea.sflag [#allocation4], %s994
          %s996 = sand.u32 %s74, 1
          %s997 = smul.addr %s996, 48
          %s998 = scalar_lea.vmem [#allocation5], %s997
          %999 = dma.done %s995, 768
        $region44: #{tpu_custom_call.1} parent=39 // pred_fallthru
          _
        // Predicated region
        $region45: #{tpu_custom_call.1} parent=39 // pred_check
          %p1000 = pneg %p117
        $region46: #{tpu_custom_call.1} parent=39 // pred_check_branch
          %1002 = sbr.rel (%p1000) target = $region48
        $region47: #{tpu_custom_call.1} parent=39 // pred_region
          %s1003 = sand.u32 %s102, 1
          %s1004 = scalar_lea.sflag [#allocation7], %s1003
          %s1005 = sand.u32 %s102, 1
          %s1006 = smul.addr %s1005, 48
          %s1007 = scalar_lea.vmem [#allocation6], %s1006
          %1008 = dma.done %s1004, 768
        $region48: #{tpu_custom_call.1} parent=39 // pred_fallthru
          _
      $region40: #{tpu_custom_call.1} parent=5 // pred_fallthru
        _
    $region6: #{tpu_custom_call.1} parent=1 // loop_footer
      %s22 = sadd.s32 1, %s18
    $region7: #{tpu_custom_call.1} parent=1 // loop_footer_branch
      %17 = sbr.rel target = $region3
    $region8: #{tpu_custom_call.1} parent=1 // loop_exit
      _
    %1009 = vsyncpa [#allocation3], 1
    %s1010 = scalar_lea.sflag [#allocation3], 1
    %1011 = vsyncpa %s1010, 1
    %1012 = vsyncpa [#allocation4], 1
    %s1013 = scalar_lea.sflag [#allocation4], 1
    %1014 = vsyncpa %s1013, 1
    %1015 = vsyncpa [#allocation7], 1
    %s1016 = scalar_lea.sflag [#allocation7], 1
    %1017 = vsyncpa %s1016, 1

</llo_original>
